<compile_context>
chip_gen: v5e
topology: v5e:2x2
jax: 0.10.0
libtpu: 0.0.40
codegen_flags: <defaults>
</compile_context>

<pallas_src>
import functools

import numpy as np

import jax
import jax.numpy as jnp
from jax.experimental import pallas as pl
from jax.experimental.pallas import tpu as pltpu


def _tap_masks(height, width):
    """(9, H*W) float32 validity masks for the 9 taps of a 3x3, pad=1 conv.

    masks[kh*3 + kw, h*W + w] == 1.0 iff input pixel (h+kh-1, w+kw-1) lies
    inside the image; 0.0 where the tap would read the (implicit) zero pad.
    """
    hh, ww = np.meshgrid(np.arange(height), np.arange(width), indexing="ij")
    masks = np.zeros((9, height * width), np.float32)
    for kh in range(3):
        for kw in range(3):
            valid = ((hh + kh - 1 >= 0) & (hh + kh - 1 < height) &
                     (ww + kw - 1 >= 0) & (ww + kw - 1 < width))
            masks[kh * 3 + kw] = valid.reshape(-1).astype(np.float32)
    return masks


def _convblock_kernel(x_ref, scale_ref, shift_ref, w_ref, b_ref, m_ref,
                      o_ref, patches_ref, *, nb, cin, width, apply_bn):
    """Fused [BN affine] -> ReLU -> 3x3 conv (+bias) for `nb` images.

    x_ref       : (nb, Cin, H*W)   f32  flattened-spatial input block (lane-dense)
    scale_ref   : (Cin, 1)         f32  BN scale  (unused when apply_bn=False)
    shift_ref   : (Cin, 1)         f32  BN shift
    w_ref       : (Cout, 9*Cin)    bf16 conv weights, column order (kh, kw, ci)
    b_ref       : (Cout, 1)        f32  conv bias
    m_ref       : (9, H*W)         f32  per-tap padding-validity masks
    o_ref       : (nb, Cout, H*W)  f32  output block (lane-dense stores)
    patches_ref : (9*Cin, H*W)     bf16 VMEM scratch for the im2col matrix
    """
    hw = o_ref.shape[-1]

    # Zero the scratch once per grid step: only the small halo strips (taps
    # that always fall outside the image and are never overwritten below)
    # rely on it.
    patches_ref[...] = jnp.zeros_like(patches_ref)

    wmat = w_ref[...]                       # reused for every image in the block
    bias = b_ref[...]

    for b in range(nb):                     # statically unrolled, small
        x = x_ref[b]                        # (Cin, H*W) f32
        if apply_bn:
            # Eval-mode BatchNorm2d folded into a per-channel affine.
            x = x * scale_ref[...] + shift_ref[...]
        x = jnp.maximum(x, 0.0)             # ReLU (f32 on the VPU; cast at the MXU)

        # Build the (9*Cin, H*W) im2col matrix: tap (kh, kw) of a pad=1 conv is
        # the flat input shifted by s = (kh-1)*W + (kw-1); the mask zeroes the
        # positions whose tap would have read the zero padding (including the
        # row-wrap positions of the flat shift).
        for kh in range(3):
            for kw in range(3):
                t = kh * 3 + kw
                s = (kh - 1) * width + (kw - 1)
                r0, r1 = t * cin, (t + 1) * cin
                if s > 0:
                    vals = x[:, s:] * m_ref[t:t + 1, :hw - s]
                    patches_ref[r0:r1, :hw - s] = vals.astype(patches_ref.dtype)
                elif s < 0:
                    vals = x[:, :hw + s] * m_ref[t:t + 1, -s:]
                    patches_ref[r0:r1, -s:] = vals.astype(patches_ref.dtype)
                else:
                    patches_ref[r0:r1, :] = x.astype(patches_ref.dtype)

        # One MXU matmul per image: (Cout, 9*Cin) x (9*Cin, H*W) -> (Cout, H*W),
        # bf16 operands, f32 accumulation; bias added on the way out.
        acc = jnp.dot(wmat, patches_ref[...], preferred_element_type=jnp.float32)
        o_ref[b] = (acc + bias).astype(o_ref.dtype)


@functools.partial(jax.jit, static_argnames=("use_bn", "batch_block"))
def conv_block_forward(x_nchw, conv_w, conv_b, bn_gamma, bn_beta, bn_mean,
                       bn_var, use_bn=False, bn_eps=1e-5, batch_block=1):
    """Pallas implementation of ConvBlock.forward.

    x_nchw : (N, Cin, H, W) float32
    conv_w : (Cout, Cin, 3, 3) float32 (PyTorch OIHW layout)
    conv_b : (Cout,) float32
    bn_*   : (Cin,) float32 eval-mode BatchNorm parameters / running stats
    returns: (N, Cout, H, W) float32
    """
    N, Cin, H, W = x_nchw.shape
    Cout = conv_w.shape[0]
    HW = H * W
    if N % batch_block != 0:
        raise ValueError(f"batch_block={batch_block} must divide N={N}")
    nb = batch_block

    # Flatten spatial dims: pure row-major layout plumbing so the kernel sees a
    # lane-dense (H*W) minor dimension.  No transposes anywhere.
    x_flat = x_nchw.reshape(N, Cin, HW).astype(jnp.float32)

    # Eval-mode BatchNorm folded to per-channel scale/shift, applied inside the
    # kernel (before the ReLU).
    # TODO(synk): training-mode BatchNorm (batch statistics) not implemented.
    if use_bn:
        scale = bn_gamma * jax.lax.rsqrt(bn_var + bn_eps)
        shift = bn_beta - bn_mean * scale
    else:
        scale = jnp.ones((Cin,), jnp.float32)
        shift = jnp.zeros((Cin,), jnp.float32)
    scale = scale.reshape(Cin, 1).astype(jnp.float32)
    shift = shift.reshape(Cin, 1).astype(jnp.float32)

    # OIHW -> (Cout, 9*Cin), column order (kh, kw, ci); bf16 feed for the MXU.
    # (Weight transforms are tiny and done once; activation tensors are not touched.)
    wmat = jnp.transpose(conv_w, (0, 2, 3, 1)).reshape(Cout, 9 * Cin)
    wmat = wmat.astype(jnp.bfloat16)
    bias = conv_b.reshape(Cout, 1).astype(jnp.float32)

    masks = jnp.asarray(_tap_masks(H, W))   # (9, H*W) compile-time constant

    kernel = functools.partial(_convblock_kernel, nb=nb, cin=Cin, width=W,
                               apply_bn=bool(use_bn))

    out_flat = pl.pallas_call(
        kernel,
        out_shape=jax.ShapeDtypeStruct((N, Cout, HW), jnp.float32),
        grid_spec=pltpu.PrefetchScalarGridSpec(
            num_scalar_prefetch=0,
            grid=(N // nb,),
            in_specs=[
                pl.BlockSpec((nb, Cin, HW), lambda n: (n, 0, 0)),
                pl.BlockSpec((Cin, 1), lambda n: (0, 0)),
                pl.BlockSpec((Cin, 1), lambda n: (0, 0)),
                pl.BlockSpec((Cout, 9 * Cin), lambda n: (0, 0)),
                pl.BlockSpec((Cout, 1), lambda n: (0, 0)),
                pl.BlockSpec((9, HW), lambda n: (0, 0)),
            ],
            out_specs=pl.BlockSpec((nb, Cout, HW), lambda n: (n, 0, 0)),
            scratch_shapes=[pltpu.VMEM((9 * Cin, HW), jnp.bfloat16)],
        ),
        compiler_params=pltpu.CompilerParams(
            dimension_semantics=("parallel",),
            vmem_limit_bytes=32 * 1024 * 1024,
        ),
    )(x_flat, scale, shift, wmat, bias, masks)

    # Back to NCHW: again a pure row-major reshape of the minor dims.
    return out_flat.reshape(N, Cout, H, W)


def _reference_forward(x_nchw, conv_w, conv_b, bn=None, bn_eps=1e-5):
    """Pure-JAX reference: [eval BN] -> ReLU -> Conv2d(3x3, stride 1, pad 1)."""
    x = x_nchw
    if bn is not None:
        gamma, beta, mean, var = bn
        scale = gamma * jax.lax.rsqrt(var + bn_eps)
        shift = beta - mean * scale
        x = x * scale[None, :, None, None] + shift[None, :, None, None]
    x = jnp.maximum(x, 0.0)
    y = jax.lax.conv_general_dilated(
        x, conv_w, window_strides=(1, 1), padding=((1, 1), (1, 1)),
        dimension_numbers=("NCHW", "OIHW", "NCHW"))
    return y + conv_b[None, :, None, None]


if __name__ == "__main__":
    key = jax.random.PRNGKey(0)
    k_x, k_w, k_b, k_g, k_be, k_m, k_v = jax.random.split(key, 7)

    N, Cin, H, W = 2, 4, 16, 16
    Cout = 8

    x = jax.random.normal(k_x, (N, Cin, H, W), dtype=jnp.float32)
    conv_w = jax.random.normal(k_w, (Cout, Cin, 3, 3), dtype=jnp.float32) * 0.1
    conv_b = jax.random.normal(k_b, (Cout,), dtype=jnp.float32) * 0.1

    bn_gamma = 1.0 + 0.1 * jax.random.normal(k_g, (Cin,), dtype=jnp.float32)
    bn_beta = 0.1 * jax.random.normal(k_be, (Cin,), dtype=jnp.float32)
    bn_mean = 0.1 * jax.random.normal(k_m, (Cin,), dtype=jnp.float32)
    bn_var = 1.0 + 0.5 * jax.random.uniform(k_v, (Cin,), dtype=jnp.float32)

    # Tolerances are loosened vs f32 because the MXU is fed bf16 (f32 accum).
    ATOL = RTOL = 3e-2

    # 1) use_bn=False (module default)
    out = jax.block_until_ready(conv_block_forward(
        x, conv_w, conv_b, bn_gamma, bn_beta, bn_mean, bn_var, use_bn=False))
    ref = jax.block_until_ready(_reference_forward(x, conv_w, conv_b))
    assert out.shape == (N, Cout, H, W), out.shape
    assert jnp.allclose(out, ref, atol=ATOL, rtol=RTOL), \
        float(jnp.max(jnp.abs(out - ref)))

    # 2) use_bn=True (eval-mode BatchNorm fused inside the kernel)
    out_bn = jax.block_until_ready(conv_block_forward(
        x, conv_w, conv_b, bn_gamma, bn_beta, bn_mean, bn_var, use_bn=True))
    ref_bn = jax.block_until_ready(_reference_forward(
        x, conv_w, conv_b, bn=(bn_gamma, bn_beta, bn_mean, bn_var)))
    assert jnp.allclose(out_bn, ref_bn, atol=ATOL, rtol=RTOL), \
        float(jnp.max(jnp.abs(out_bn - ref_bn)))

    # 3) batch_block=2: both images in one grid step (per-step overhead amortization)
    out_nb2 = jax.block_until_ready(conv_block_forward(
        x, conv_w, conv_b, bn_gamma, bn_beta, bn_mean, bn_var,
        use_bn=False, batch_block=2))
    assert jnp.allclose(out_nb2, out, atol=1e-5, rtol=1e-5), \
        float(jnp.max(jnp.abs(out_nb2 - out)))

    print("KERNEL_OK")
</pallas_src>

<mosaic_0001>
module attributes {stable_mosaic.version = 11 : i64} {
  func.func @_convblock_kernel(%arg0: i32, %arg1: memref<1x4x256xf32, #tpu.memory_space<vmem>>, %arg2: memref<4x1xf32, #tpu.memory_space<vmem>>, %arg3: memref<4x1xf32, #tpu.memory_space<vmem>>, %arg4: memref<8x36xbf16, #tpu.memory_space<vmem>>, %arg5: memref<8x1xf32, #tpu.memory_space<vmem>>, %arg6: memref<9x256xf32, #tpu.memory_space<vmem>>, %arg7: memref<1x8x256xf32, #tpu.memory_space<vmem>>, %arg8: memref<36x256xbf16, #tpu.memory_space<vmem>>) attributes {dimension_semantics = [#tpu.dimension_semantics<parallel>], iteration_bounds = array<i64: 2>, scalar_prefetch = 0 : i64, scratch_operands = 1 : i64, tpu.core_type = #tpu.core_type<tc>, window_params = [{transform_indices = @transform_0, window_bounds = array<i64: 1, 4, 256>}, {pipeline_mode = #tpu.pipeline_mode<synchronous>, transform_indices = @transform_1, window_bounds = array<i64: 4, 1>}, {pipeline_mode = #tpu.pipeline_mode<synchronous>, transform_indices = @transform_2, window_bounds = array<i64: 4, 1>}, {pipeline_mode = #tpu.pipeline_mode<synchronous>, transform_indices = @transform_3, window_bounds = array<i64: 8, 36>}, {pipeline_mode = #tpu.pipeline_mode<synchronous>, transform_indices = @transform_4, window_bounds = array<i64: 8, 1>}, {pipeline_mode = #tpu.pipeline_mode<synchronous>, transform_indices = @transform_5, window_bounds = array<i64: 9, 256>}, {transform_indices = @transform_6, window_bounds = array<i64: 1, 8, 256>}]} {
    %cst = arith.constant 0.000000e+00 : bf16
    %0 = vector.broadcast %cst : bf16 to vector<36x256xbf16>
    %c0 = arith.constant 0 : index
    %c0_0 = arith.constant 0 : index
    %1 = vector.load %arg8[%c0, %c0_0] : memref<36x256xbf16, #tpu.memory_space<vmem>>, vector<36x256xbf16>
    tpu.vector_store %arg8[%c0, %c0_0], %0 {strides = array<i32>} : memref<36x256xbf16, #tpu.memory_space<vmem>>, vector<36x256xbf16>,
    %c0_1 = arith.constant 0 : index
    %c0_2 = arith.constant 0 : index
    %2 = vector.load %arg4[%c0_1, %c0_2] : memref<8x36xbf16, #tpu.memory_space<vmem>>, vector<8x36xbf16>
    %c0_3 = arith.constant 0 : index
    %c0_4 = arith.constant 0 : index
    %3 = vector.load %arg5[%c0_3, %c0_4] : memref<8x1xf32, #tpu.memory_space<vmem>>, vector<8x1xf32>
    %c0_5 = arith.constant 0 : index
    %c0_6 = arith.constant 0 : index
    %c0_7 = arith.constant 0 : index
    %4 = vector.load %arg1[%c0_5, %c0_6, %c0_7] : memref<1x4x256xf32, #tpu.memory_space<vmem>>, vector<1x4x256xf32>
    %5 = vector.shape_cast %4 : vector<1x4x256xf32> to vector<4x256xf32>
    %cst_8 = arith.constant 0.000000e+00 : f32
    %6 = vector.broadcast %cst_8 : f32 to vector<4x256xf32>
    %7 = arith.maximumf %5, %6 : vector<4x256xf32>
    %8 = vector.extract_strided_slice %7 {offsets = [0, 0], sizes = [4, 239], strides = [1, 1]} : vector<4x256xf32> to vector<4x239xf32>
    %c0_9 = arith.constant 0 : index
    %c17 = arith.constant 17 : index
    %9 = vector.load %arg6[%c0_9, %c17] : memref<9x256xf32, #tpu.memory_space<vmem>>, vector<1x239xf32>
    %10 = vector.broadcast %9 : vector<1x239xf32> to vector<4x239xf32>
    %11 = arith.mulf %8, %10 : vector<4x239xf32>
    %12 = arith.truncf %11 : vector<4x239xf32> to vector<4x239xbf16>
    %c0_10 = arith.constant 0 : index
    %c17_11 = arith.constant 17 : index
    %13 = vector.load %arg8[%c0_10, %c17_11] : memref<36x256xbf16, #tpu.memory_space<vmem>>, vector<4x239xbf16>
    tpu.vector_store %arg8[%c0_10, %c17_11], %12 {strides = array<i32>} : memref<36x256xbf16, #tpu.memory_space<vmem>>, vector<4x239xbf16>,
    %14 = vector.extract_strided_slice %7 {offsets = [0, 0], sizes = [4, 240], strides = [1, 1]} : vector<4x256xf32> to vector<4x240xf32>
    %c1 = arith.constant 1 : index
    %c16 = arith.constant 16 : index
    %15 = vector.load %arg6[%c1, %c16] : memref<9x256xf32, #tpu.memory_space<vmem>>, vector<1x240xf32>
    %16 = vector.broadcast %15 : vector<1x240xf32> to vector<4x240xf32>
    %17 = arith.mulf %14, %16 : vector<4x240xf32>
    %18 = arith.truncf %17 : vector<4x240xf32> to vector<4x240xbf16>
    %c4 = arith.constant 4 : index
    %c16_12 = arith.constant 16 : index
    %19 = vector.load %arg8[%c4, %c16_12] : memref<36x256xbf16, #tpu.memory_space<vmem>>, vector<4x240xbf16>
    tpu.vector_store %arg8[%c4, %c16_12], %18 {strides = array<i32>} : memref<36x256xbf16, #tpu.memory_space<vmem>>, vector<4x240xbf16>,
    %20 = vector.extract_strided_slice %7 {offsets = [0, 0], sizes = [4, 241], strides = [1, 1]} : vector<4x256xf32> to vector<4x241xf32>
    %c2 = arith.constant 2 : index
    %c15 = arith.constant 15 : index
    %21 = vector.load %arg6[%c2, %c15] : memref<9x256xf32, #tpu.memory_space<vmem>>, vector<1x241xf32>
    %22 = vector.broadcast %21 : vector<1x241xf32> to vector<4x241xf32>
    %23 = arith.mulf %20, %22 : vector<4x241xf32>
    %24 = arith.truncf %23 : vector<4x241xf32> to vector<4x241xbf16>
    %c8 = arith.constant 8 : index
    %c15_13 = arith.constant 15 : index
    %25 = vector.load %arg8[%c8, %c15_13] : memref<36x256xbf16, #tpu.memory_space<vmem>>, vector<4x241xbf16>
    tpu.vector_store %arg8[%c8, %c15_13], %24 {strides = array<i32>} : memref<36x256xbf16, #tpu.memory_space<vmem>>, vector<4x241xbf16>,
    %26 = vector.extract_strided_slice %7 {offsets = [0, 0], sizes = [4, 255], strides = [1, 1]} : vector<4x256xf32> to vector<4x255xf32>
    %c3 = arith.constant 3 : index
    %c1_14 = arith.constant 1 : index
    %27 = vector.load %arg6[%c3, %c1_14] : memref<9x256xf32, #tpu.memory_space<vmem>>, vector<1x255xf32>
    %28 = vector.broadcast %27 : vector<1x255xf32> to vector<4x255xf32>
    %29 = arith.mulf %26, %28 : vector<4x255xf32>
    %30 = arith.truncf %29 : vector<4x255xf32> to vector<4x255xbf16>
    %c12 = arith.constant 12 : index
    %c1_15 = arith.constant 1 : index
    %31 = vector.load %arg8[%c12, %c1_15] : memref<36x256xbf16, #tpu.memory_space<vmem>>, vector<4x255xbf16>
    tpu.vector_store %arg8[%c12, %c1_15], %30 {strides = array<i32>} : memref<36x256xbf16, #tpu.memory_space<vmem>>, vector<4x255xbf16>,
    %32 = arith.truncf %7 : vector<4x256xf32> to vector<4x256xbf16>
    %c16_16 = arith.constant 16 : index
    %c0_17 = arith.constant 0 : index
    %33 = vector.load %arg8[%c16_16, %c0_17] : memref<36x256xbf16, #tpu.memory_space<vmem>>, vector<4x256xbf16>
    tpu.vector_store %arg8[%c16_16, %c0_17], %32 {strides = array<i32>} : memref<36x256xbf16, #tpu.memory_space<vmem>>, vector<4x256xbf16>,
    %34 = vector.extract_strided_slice %7 {offsets = [0, 1], sizes = [4, 255], strides = [1, 1]} : vector<4x256xf32> to vector<4x255xf32>
    %c5 = arith.constant 5 : index
    %c0_18 = arith.constant 0 : index
    %35 = vector.load %arg6[%c5, %c0_18] : memref<9x256xf32, #tpu.memory_space<vmem>>, vector<1x255xf32>
    %36 = vector.broadcast %35 : vector<1x255xf32> to vector<4x255xf32>
    %37 = arith.mulf %34, %36 : vector<4x255xf32>
    %38 = arith.truncf %37 : vector<4x255xf32> to vector<4x255xbf16>
    %c20 = arith.constant 20 : index
    %c0_19 = arith.constant 0 : index
    %39 = vector.load %arg8[%c20, %c0_19] : memref<36x256xbf16, #tpu.memory_space<vmem>>, vector<4x255xbf16>
    tpu.vector_store %arg8[%c20, %c0_19], %38 {strides = array<i32>} : memref<36x256xbf16, #tpu.memory_space<vmem>>, vector<4x255xbf16>,
    %40 = vector.extract_strided_slice %7 {offsets = [0, 15], sizes = [4, 241], strides = [1, 1]} : vector<4x256xf32> to vector<4x241xf32>
    %c6 = arith.constant 6 : index
    %c0_20 = arith.constant 0 : index
    %41 = vector.load %arg6[%c6, %c0_20] : memref<9x256xf32, #tpu.memory_space<vmem>>, vector<1x241xf32>
    %42 = vector.broadcast %41 : vector<1x241xf32> to vector<4x241xf32>
    %43 = arith.mulf %40, %42 : vector<4x241xf32>
    %44 = arith.truncf %43 : vector<4x241xf32> to vector<4x241xbf16>
    %c24 = arith.constant 24 : index
    %c0_21 = arith.constant 0 : index
    %45 = vector.load %arg8[%c24, %c0_21] : memref<36x256xbf16, #tpu.memory_space<vmem>>, vector<4x241xbf16>
    tpu.vector_store %arg8[%c24, %c0_21], %44 {strides = array<i32>} : memref<36x256xbf16, #tpu.memory_space<vmem>>, vector<4x241xbf16>,
    %46 = vector.extract_strided_slice %7 {offsets = [0, 16], sizes = [4, 240], strides = [1, 1]} : vector<4x256xf32> to vector<4x240xf32>
    %c7 = arith.constant 7 : index
    %c0_22 = arith.constant 0 : index
    %47 = vector.load %arg6[%c7, %c0_22] : memref<9x256xf32, #tpu.memory_space<vmem>>, vector<1x240xf32>
    %48 = vector.broadcast %47 : vector<1x240xf32> to vector<4x240xf32>
    %49 = arith.mulf %46, %48 : vector<4x240xf32>
    %50 = arith.truncf %49 : vector<4x240xf32> to vector<4x240xbf16>
    %c28 = arith.constant 28 : index
    %c0_23 = arith.constant 0 : index
    %51 = vector.load %arg8[%c28, %c0_23] : memref<36x256xbf16, #tpu.memory_space<vmem>>, vector<4x240xbf16>
    tpu.vector_store %arg8[%c28, %c0_23], %50 {strides = array<i32>} : memref<36x256xbf16, #tpu.memory_space<vmem>>, vector<4x240xbf16>,
    %52 = vector.extract_strided_slice %7 {offsets = [0, 17], sizes = [4, 239], strides = [1, 1]} : vector<4x256xf32> to vector<4x239xf32>
    %c8_24 = arith.constant 8 : index
    %c0_25 = arith.constant 0 : index
    %53 = vector.load %arg6[%c8_24, %c0_25] : memref<9x256xf32, #tpu.memory_space<vmem>>, vector<1x239xf32>
    %54 = vector.broadcast %53 : vector<1x239xf32> to vector<4x239xf32>
    %55 = arith.mulf %52, %54 : vector<4x239xf32>
    %56 = arith.truncf %55 : vector<4x239xf32> to vector<4x239xbf16>
    %c32 = arith.constant 32 : index
    %c0_26 = arith.constant 0 : index
    %57 = vector.load %arg8[%c32, %c0_26] : memref<36x256xbf16, #tpu.memory_space<vmem>>, vector<4x239xbf16>
    tpu.vector_store %arg8[%c32, %c0_26], %56 {strides = array<i32>} : memref<36x256xbf16, #tpu.memory_space<vmem>>, vector<4x239xbf16>,
    %c0_27 = arith.constant 0 : index
    %c0_28 = arith.constant 0 : index
    %58 = vector.load %arg8[%c0_27, %c0_28] : memref<36x256xbf16, #tpu.memory_space<vmem>>, vector<36x256xbf16>
    %cst_29 = arith.constant dense<0.000000e+00> : vector<8x256xf32>
    %59 = tpu.matmul %2, %58, %cst_29 {dimension_numbers = #tpu.dot_dimension_numbers<[1], [0], [0], [1], [0, 0, 1, 1], [], []>} : vector<8x36xbf16>, vector<36x256xbf16>, vector<8x256xf32> -> vector<8x256xf32>
    %60 = vector.broadcast %3 : vector<8x1xf32> to vector<8x256xf32>
    %61 = arith.addf %59, %60 : vector<8x256xf32>
    %c0_30 = arith.constant 0 : index
    %c0_31 = arith.constant 0 : index
    %c0_32 = arith.constant 0 : index
    %62 = vector.load %arg7[%c0_30, %c0_31, %c0_32] : memref<1x8x256xf32, #tpu.memory_space<vmem>>, vector<1x8x256xf32>
    %63 = vector.shape_cast %62 : vector<1x8x256xf32> to vector<8x256xf32>
    %64 = vector.shape_cast %61 : vector<8x256xf32> to vector<1x8x256xf32>
    tpu.vector_store %arg7[%c0_30, %c0_31, %c0_32], %64 {strides = array<i32>} : memref<1x8x256xf32, #tpu.memory_space<vmem>>, vector<1x8x256xf32>,
    return
  }
  func.func @transform_0(%arg0: i32) -> (i32, i32, i32) {
    %c0_i32 = arith.constant 0 : i32
    %c0_i32_0 = arith.constant 0 : i32
    %c0_i32_1 = arith.constant 0 : i32
    return %arg0, %c0_i32, %c0_i32_0 : i32, i32, i32
  }
  func.func @transform_1(%arg0: i32) -> (i32, i32) {
    %c0_i32 = arith.constant 0 : i32
    %c0_i32_0 = arith.constant 0 : i32
    %c0_i32_1 = arith.constant 0 : i32
    return %c0_i32, %c0_i32_0 : i32, i32
  }
  func.func @transform_2(%arg0: i32) -> (i32, i32) {
    %c0_i32 = arith.constant 0 : i32
    %c0_i32_0 = arith.constant 0 : i32
    %c0_i32_1 = arith.constant 0 : i32
    return %c0_i32, %c0_i32_0 : i32, i32
  }
  func.func @transform_3(%arg0: i32) -> (i32, i32) {
    %c0_i32 = arith.constant 0 : i32
    %c0_i32_0 = arith.constant 0 : i32
    %c0_i32_1 = arith.constant 0 : i32
    return %c0_i32, %c0_i32_0 : i32, i32
  }
  func.func @transform_4(%arg0: i32) -> (i32, i32) {
    %c0_i32 = arith.constant 0 : i32
    %c0_i32_0 = arith.constant 0 : i32
    %c0_i32_1 = arith.constant 0 : i32
    return %c0_i32, %c0_i32_0 : i32, i32
  }
  func.func @transform_5(%arg0: i32) -> (i32, i32) {
    %c0_i32 = arith.constant 0 : i32
    %c0_i32_0 = arith.constant 0 : i32
    %c0_i32_1 = arith.constant 0 : i32
    return %c0_i32, %c0_i32_0 : i32, i32
  }
  func.func @transform_6(%arg0: i32) -> (i32, i32, i32) {
    %c0_i32 = arith.constant 0 : i32
    %c0_i32_0 = arith.constant 0 : i32
    %c0_i32_1 = arith.constant 0 : i32
    return %arg0, %c0_i32, %c0_i32_0 : i32, i32, i32
  }
}

</mosaic_0001>

<llo_original>
// kernel: conv_block_forward.1
$region0: #{conv_block_forward.1}
  #allocation0 [shape = 'u32[]', space=smem, size = 0x4, offset = 0x4, fixed_abs, tag = 'smem constant byte address 0x4 - core index']
  #allocation1 [shape = 'u32[72,128]{1,0:T(1,128)}', space=vmem, size = 0x9000, scoped, tag = 'internal scratch']
  #allocation2 [shape = 'bf16[36,256]{1,0:T(8,128)(2,1)}', space=vmem, size = 0x5000, scoped, tag = 'scratch operand']
  %s0 = inlined_call_operand.vmem [shape: f32[2,4,256], index: 0, kind: input, shape index: {}]
  %s1 = inlined_call_operand.vmem [shape: f32[4,1], index: 1, kind: input, shape index: {}]
  %s2 = inlined_call_operand.vmem [shape: f32[4,1], index: 2, kind: input, shape index: {}]
  %s3 = inlined_call_operand.vmem [shape: bf16[8,36], index: 3, kind: input, shape index: {}]
  %s4 = inlined_call_operand.vmem [shape: f32[8,1], index: 4, kind: input, shape index: {}]
  %s5 = inlined_call_operand.vmem [shape: f32[9,256], index: 5, kind: input, shape index: {}]
  %s6 = inlined_call_operand.vmem [shape: f32[2,8,256], index: 6, kind: output, shape index: {}]
  %s7 = sld [smem:[#allocation0]]
  $region57: #{conv_block_forward.1} parent=0
    _
  %s9 = ssub.s32 1, %s7
  %s10 = scalar_select 0, %s9, %s7
  loop: start=0, step=1, limit=4
  $region2: #{conv_block_forward.1} parent=0 // loop_pre_header
    _
  $region3: #{conv_block_forward.1} parent=0 // loop_header
    %s12 = sphi 0, %s16
    %p13 = scmp.ge.s32.totalorder %s12, 4
    %s22 = sphi 0, %s24
    %s25 = sphi 0, %s22
    %s26 = sphi 0, %s25
    %s42 = sphi 0, %s26
    %s46 = sphi 0, %s46
    %s48 = sphi 0, %s46
    %s49 = sphi 0, %s48
    %s63 = sphi 0, %s49
    %s67 = sphi 0, %s67
    %s69 = sphi 0, %s67
    %s70 = sphi 0, %s69
    %s84 = sphi 0, %s70
    %s88 = sphi 0, %s88
    %s90 = sphi 0, %s88
    %s91 = sphi 0, %s90
    %s105 = sphi 0, %s91
    %s109 = sphi 0, %s109
    %s111 = sphi 0, %s109
    %s112 = sphi 0, %s111
    %s126 = sphi 0, %s112
    %s130 = sphi 0, %s130
    %s132 = sphi 0, %s130
    %s133 = sphi 0, %s132
    %s147 = sphi 0, %s133
    %s153 = sphi 0, %s155
    %s156 = sphi 0, %s153
    %s157 = sphi 0, %s156
    %s173 = sphi 0, %s157
  $region4: #{conv_block_forward.1} parent=0 // loop_header_branch
    %15 = sbr.rel (%p13) target = $region8
  $region5: #{conv_block_forward.1} parent=0 // loop_body
    %s17 = ssub.s32 %s12, 1
    %s18 = ssub.s32 %s12, 2
    %s19 = sadd.s32 %s12, 1
    %s20 = ssub.s32 %s12, %s19
    %p21 = scmp.eq.s32.totalorder %s20, 0
    %s23 = sadd.s32 %s22, 1
    %s24 = scalar_select %p21, %s22, %s23
    %p27 = pneg %p21
    %p28 = scmp.eq.s32.totalorder %s12, 1
    %p29 = por %p27, %p28
    %p30 = scmp.ne.s32.totalorder %s22, %s25
    %p31 = scmp.eq.s32.totalorder %s12, 0
    %p32 = por %p30, %p31
    %p33 = scmp.ne.s32.totalorder %s22, %s25
    %p34 = scmp.eq.s32.totalorder %s17, 1
    %p35 = por %p33, %p34
    %p36 = scmp.ne.s32.totalorder %s25, %s26
    %p37 = scmp.eq.s32.totalorder %s17, 0
    %p38 = por %p36, %p37
    %p39 = scmp.ne.s32.totalorder %s25, %s26
    %p40 = scmp.eq.s32.totalorder %s18, 1
    %p41 = por %p39, %p40
    %p43 = scmp.ne.s32.totalorder %s26, %s42
    %p44 = scmp.eq.s32.totalorder %s18, 0
    %p45 = por %p43, %p44
    %s47 = sadd.s32 %s46, 1
    %p50 = scmp.eq.s32.totalorder %s12, 1
    %p51 = scmp.ne.s32.totalorder %s46, %s48
    %p52 = scmp.eq.s32.totalorder %s12, 0
    %p53 = por %p51, %p52
    %p54 = scmp.ne.s32.totalorder %s46, %s48
    %p55 = scmp.eq.s32.totalorder %s17, 1
    %p56 = por %p54, %p55
    %p57 = scmp.ne.s32.totalorder %s48, %s49
    %p58 = scmp.eq.s32.totalorder %s17, 0
    %p59 = por %p57, %p58
    %p60 = scmp.ne.s32.totalorder %s48, %s49
    %p61 = scmp.eq.s32.totalorder %s18, 1
    %p62 = por %p60, %p61
    %p64 = scmp.ne.s32.totalorder %s49, %s63
    %p65 = scmp.eq.s32.totalorder %s18, 0
    %p66 = por %p64, %p65
    %s68 = sadd.s32 %s67, 1
    %p71 = scmp.eq.s32.totalorder %s12, 1
    %p72 = scmp.ne.s32.totalorder %s67, %s69
    %p73 = scmp.eq.s32.totalorder %s12, 0
    %p74 = por %p72, %p73
    %p75 = scmp.ne.s32.totalorder %s67, %s69
    %p76 = scmp.eq.s32.totalorder %s17, 1
    %p77 = por %p75, %p76
    %p78 = scmp.ne.s32.totalorder %s69, %s70
    %p79 = scmp.eq.s32.totalorder %s17, 0
    %p80 = por %p78, %p79
    %p81 = scmp.ne.s32.totalorder %s69, %s70
    %p82 = scmp.eq.s32.totalorder %s18, 1
    %p83 = por %p81, %p82
    %p85 = scmp.ne.s32.totalorder %s70, %s84
    %p86 = scmp.eq.s32.totalorder %s18, 0
    %p87 = por %p85, %p86
    %s89 = sadd.s32 %s88, 1
    %p92 = scmp.eq.s32.totalorder %s12, 1
    %p93 = scmp.ne.s32.totalorder %s88, %s90
    %p94 = scmp.eq.s32.totalorder %s12, 0
    %p95 = por %p93, %p94
    %p96 = scmp.ne.s32.totalorder %s88, %s90
    %p97 = scmp.eq.s32.totalorder %s17, 1
    %p98 = por %p96, %p97
    %p99 = scmp.ne.s32.totalorder %s90, %s91
    %p100 = scmp.eq.s32.totalorder %s17, 0
    %p101 = por %p99, %p100
    %p102 = scmp.ne.s32.totalorder %s90, %s91
    %p103 = scmp.eq.s32.totalorder %s18, 1
    %p104 = por %p102, %p103
    %p106 = scmp.ne.s32.totalorder %s91, %s105
    %p107 = scmp.eq.s32.totalorder %s18, 0
    %p108 = por %p106, %p107
    %s110 = sadd.s32 %s109, 1
    %p113 = scmp.eq.s32.totalorder %s12, 1
    %p114 = scmp.ne.s32.totalorder %s109, %s111
    %p115 = scmp.eq.s32.totalorder %s12, 0
    %p116 = por %p114, %p115
    %p117 = scmp.ne.s32.totalorder %s109, %s111
    %p118 = scmp.eq.s32.totalorder %s17, 1
    %p119 = por %p117, %p118
    %p120 = scmp.ne.s32.totalorder %s111, %s112
    %p121 = scmp.eq.s32.totalorder %s17, 0
    %p122 = por %p120, %p121
    %p123 = scmp.ne.s32.totalorder %s111, %s112
    %p124 = scmp.eq.s32.totalorder %s18, 1
    %p125 = por %p123, %p124
    %p127 = scmp.ne.s32.totalorder %s112, %s126
    %p128 = scmp.eq.s32.totalorder %s18, 0
    %p129 = por %p127, %p128
    %s131 = sadd.s32 %s130, 1
    %p134 = scmp.eq.s32.totalorder %s12, 1
    %p135 = scmp.ne.s32.totalorder %s130, %s132
    %p136 = scmp.eq.s32.totalorder %s12, 0
    %p137 = por %p135, %p136
    %p138 = scmp.ne.s32.totalorder %s130, %s132
    %p139 = scmp.eq.s32.totalorder %s17, 1
    %p140 = por %p138, %p139
    %p141 = scmp.ne.s32.totalorder %s132, %s133
    %p142 = scmp.eq.s32.totalorder %s17, 0
    %p143 = por %p141, %p142
    %p144 = scmp.ne.s32.totalorder %s132, %s133
    %p145 = scmp.eq.s32.totalorder %s18, 1
    %p146 = por %p144, %p145
    %p148 = scmp.ne.s32.totalorder %s133, %s147
    %p149 = scmp.eq.s32.totalorder %s18, 0
    %p150 = por %p148, %p149
    %s151 = ssub.s32 %s12, %s19
    %p152 = scmp.eq.s32.totalorder %s151, 0
    %s154 = sadd.s32 %s153, 1
    %s155 = scalar_select %p152, %s153, %s154
    %p158 = pneg %p152
    %p159 = scmp.eq.s32.totalorder %s12, 1
    %p160 = por %p158, %p159
    %p161 = scmp.ne.s32.totalorder %s153, %s156
    %p162 = scmp.eq.s32.totalorder %s12, 0
    %p163 = por %p161, %p162
    %p164 = scmp.ne.s32.totalorder %s153, %s156
    %p165 = scmp.eq.s32.totalorder %s17, 1
    %p166 = por %p164, %p165
    %p167 = scmp.ne.s32.totalorder %s156, %s157
    %p168 = scmp.eq.s32.totalorder %s17, 0
    %p169 = por %p167, %p168
    %p170 = scmp.ne.s32.totalorder %s156, %s157
    %p171 = scmp.eq.s32.totalorder %s18, 1
    %p172 = por %p170, %p171
    %p174 = scmp.ne.s32.totalorder %s157, %s173
    %p175 = scmp.eq.s32.totalorder %s18, 0
    %p176 = por %p174, %p175
    %p177 = scmp.le.s32.totalorder 1, %s12
    %p178 = scmp.lt.s32.totalorder %s12, 3
    %p179 = pnand %p177, %p178
    %p180 = pneg %p179
    // Predicated region
    $region9: #{conv_block_forward.1} parent=5 // pred_check
      _
    $region10: #{conv_block_forward.1} parent=5 // pred_check_branch
      %182 = sbr.rel (%p179) target = $region12
    $region11: #{conv_block_forward.1} parent=5 // pred_region
      %s183 = ssub.s32 %s12, 1
      // Predicated region
      $region13: #{conv_block_forward.1} parent=11 // pred_check
        %p184 = pneg %p59
      $region14: #{conv_block_forward.1} parent=11 // pred_check_branch
        %186 = sbr.rel (%p184) target = $region16
      $region15: #{conv_block_forward.1} parent=11 // pred_region
        _
      $region16: #{conv_block_forward.1} parent=11 // pred_fallthru
        _
      // Predicated region
      $region17: #{conv_block_forward.1} parent=11 // pred_check
        %p187 = pneg %p80
      $region18: #{conv_block_forward.1} parent=11 // pred_check_branch
        %189 = sbr.rel (%p187) target = $region20
      $region19: #{conv_block_forward.1} parent=11 // pred_region
        _
      $region20: #{conv_block_forward.1} parent=11 // pred_fallthru
        _
      // Predicated region
      $region21: #{conv_block_forward.1} parent=11 // pred_check
        %p190 = pneg %p101
      $region22: #{conv_block_forward.1} parent=11 // pred_check_branch
        %192 = sbr.rel (%p190) target = $region24
      $region23: #{conv_block_forward.1} parent=11 // pred_region
        _
      $region24: #{conv_block_forward.1} parent=11 // pred_fallthru
        _
      // Predicated region
      $region25: #{conv_block_forward.1} parent=11 // pred_check
        %p193 = pneg %p122
      $region26: #{conv_block_forward.1} parent=11 // pred_check_branch
        %195 = sbr.rel (%p193) target = $region28
      $region27: #{conv_block_forward.1} parent=11 // pred_region
        _
      $region28: #{conv_block_forward.1} parent=11 // pred_fallthru
        _
      // Predicated region
      $region29: #{conv_block_forward.1} parent=11 // pred_check
        %p196 = pneg %p143
      $region30: #{conv_block_forward.1} parent=11 // pred_check_branch
        %198 = sbr.rel (%p196) target = $region32
      $region31: #{conv_block_forward.1} parent=11 // pred_region
        _
      $region32: #{conv_block_forward.1} parent=11 // pred_fallthru
        _
    $region12: #{conv_block_forward.1} parent=5 // pred_fallthru
      _
    %p199 = scmp.lt.s32.totalorder %s12, 2
    // Predicated region
    $region33: #{conv_block_forward.1} parent=5 // pred_check
      %p200 = pneg %p199
    $region34: #{conv_block_forward.1} parent=5 // pred_check_branch
      %202 = sbr.rel (%p200) target = $region36
    $region35: #{conv_block_forward.1} parent=5 // pred_region
      // Predicated region
      $region37: #{conv_block_forward.1} parent=35 // pred_check
        %p203 = pneg %p32
      $region38: #{conv_block_forward.1} parent=35 // pred_check_branch
        %205 = sbr.rel (%p203) target = $region40
      $region39: #{conv_block_forward.1} parent=35 // pred_region
        %p206 = scmp.lt.s32.totalorder %s12, 1
        %s207 = scalar_select %p206, %s12, 1
        %s208 = smul.addr %s207, 2
        %s209 = smul.addr %s208, 4
        %s210 = scalar_lea.vmem %s0, %s209
      $region40: #{conv_block_forward.1} parent=35 // pred_fallthru
        _
    $region36: #{conv_block_forward.1} parent=5 // pred_fallthru
      _
    %p211 = scmp.le.s32.totalorder 1, %s12
    %p212 = scmp.lt.s32.totalorder %s12, 3
    %p213 = pnand %p211, %p212
    %p214 = pneg %p213
    // Predicated region
    $region41: #{conv_block_forward.1} parent=5 // pred_check
      _
    $region42: #{conv_block_forward.1} parent=5 // pred_check_branch
      %216 = sbr.rel (%p213) target = $region44
    $region43: #{conv_block_forward.1} parent=5 // pred_region
      %s217 = ssub.s32 %s12, 1
      %p218 = scmp.lt.s32.totalorder %s17, 1
      %s219 = scalar_select %p218, %s17, 1
      %s220 = smul.addr %s219, 2
      %s221 = smul.addr %s220, 4
      %s222 = scalar_lea.vmem %s0, %s221
      %p223 = pneg %p38
      %p224 = pneg %p35
      %p225 = pneg %p59
      %p226 = pneg %p56
      %p227 = pneg %p80
      %p228 = pneg %p77
      %p229 = pneg %p101
      %p230 = pneg %p98
      %p231 = pneg %p122
      %p232 = pneg %p119
      %p233 = pneg %p143
      %p234 = pneg %p140
      %p235 = pneg %p169
      %p236 = pneg %p166
      %p237 = scmp.lt.s32.totalorder %s17, 1
      %s238 = scalar_select %p237, %s17, 1
      %s239 = smul.addr %s238, 2
      %s240 = smul.addr %s239, 8
      %s241 = scalar_lea.vmem %s6, %s240
      %p242 = scmp.lt.s32.totalorder %s17, 1
      %s243 = scalar_select %p242, %s17, 1
      %s244 = smul.addr %s243, 2
      %s245 = smul.addr %s244, 4
      %s246 = scalar_lea.vmem %s0, %s245
      %p247 = scmp.lt.s32.totalorder %s17, 1
      %s248 = scalar_select %p247, %s17, 1
      %s249 = smul.addr %s248, 2
      %s250 = smul.addr %s249, 8
      %s251 = scalar_lea.vmem %s6, %s250
      %253 = vst [vmem:[#allocation2] sm:$0xff] 0
      %254 = vst [vmem:[#allocation2 + $0x8] sm:$0xff] 0
      %255 = vst [vmem:[#allocation2 + $0x10] sm:$0xff] 0
      %256 = vst [vmem:[#allocation2 + $0x18] sm:$0xff] 0
      %257 = vst [vmem:[#allocation2 + $0x20] sm:$0x33] 0
      %v258 = vld [vmem:[%s3] sm:$0xf]
      %v259 = vld [vmem:[%s4] sm:$0xff]
      %v260 = vld [vmem:[%s246] sm:$0xff]
      %v261 = vmax.f32 %v260, 0.0
      %v262 = vld [vmem:[%s5] ss:$8 sm:$0x3]
      %v264 = vperm.slane %v262, 0
      %v265 = vperm.slane %v262, 1
      %v266 = vrot.slane %v265, 4
      %vm267 = vcmask 1043456
      %v268 = vsel %vm267, %v264, %v266
      %269 = vrot.lane.b32.xlu0 %v268, 111
      %v270 = vpop.permute.xlu0 %269
      %v271 = vrot.slane %v270, 4
      %vm272 = vcmask 908288
      %v273 = vsel %vm272, %v270, %v271
      %v275 = vmul.f32 %v261, %v273
      %277 = vst [vmem:[#allocation1] ss:$2 sm:$0xff] %v275
      %v278 = vld.sshfl [vmem:[#allocation1] sm:$0xff pattern:$0x75316420]
      %v279 = vld.sshfl [vmem:[#allocation1 + $0x8] sm:$0xff pattern:$0x75316420]
      %v282 = vpack.c.bf16 %v279, %v278
      %284 = vrot.lane.b32.xlu0 %v282, 17
      %v285 = vpop.permute.xlu0 %284
      %v286 = vrot.slane %v285, 4
      %vm287 = vcmask 138240
      %v288 = vsel %vm287, %v286, %v285
      %vm290 = vcmask 1041544
      %vm291 = vcmask 1045508
      %vm292 = vmor %vm291, %vm290
      %293 = vst.msk [vmem:[#allocation2] sm:$0x33] %vm292, %v288
      %s294 = scalar_lea.vmem %s5, 1
      %v295 = vld [vmem:[%s294] ss:$8 sm:$0x3]
      %v297 = vperm.slane %v295, 0
      %v298 = vperm.slane %v295, 1
      %v299 = vrot.slane %v298, 4
      %v300 = vsel %vm267, %v297, %v299
      %301 = vrot.lane.b32.xlu0 %v300, 112
      %v302 = vpop.permute.xlu0 %301
      %v303 = vrot.slane %v302, 4
      %vm304 = vcmask 916480
      %v305 = vsel %vm304, %v302, %v303
      %v307 = vmul.f32 %v261, %v305
      %309 = vst [vmem:[#allocation1] ss:$2 sm:$0xff] %v307
      %v310 = vld.sshfl [vmem:[#allocation1] sm:$0xff pattern:$0x75316420]
      %v311 = vld.sshfl [vmem:[#allocation1 + $0x8] sm:$0xff pattern:$0x75316420]
      %v314 = vpack.c.bf16 %v311, %v310
      %v316 = vrot.slane %v314, 6
      %317 = vrot.lane.b32.xlu0 %v316, 16
      %v318 = vpop.permute.xlu0 %317
      %v319 = vrot.slane %v318, 4
      %vm320 = vcmask 130048
      %v321 = vsel %vm320, %v319, %v318
      %vm323 = vcmask 1043586
      %vm324 = vcmask 1047558
      %vm325 = vmor %vm324, %vm323
      %326 = vst.msk [vmem:[#allocation2] sm:$0xcc] %vm325, %v321
      %s327 = scalar_lea.vmem %s5, 2
      %v328 = vld [vmem:[%s327] ss:$8 sm:$0x3]
      %v330 = vperm.slane %v328, 0
      %v331 = vperm.slane %v328, 1
      %v332 = vrot.slane %v331, 4
      %v333 = vsel %vm267, %v330, %v332
      %334 = vrot.lane.b32.xlu0 %v333, 113
      %v335 = vpop.permute.xlu0 %334
      %v336 = vrot.slane %v335, 4
      %vm337 = vcmask 924672
      %v338 = vsel %vm337, %v335, %v336
      %v340 = vmul.f32 %v261, %v338
      %342 = vst [vmem:[#allocation1] ss:$2 sm:$0xff] %v340
      %v343 = vld.sshfl [vmem:[#allocation1] sm:$0xff pattern:$0x75316420]
      %v344 = vld.sshfl [vmem:[#allocation1 + $0x8] sm:$0xff pattern:$0x75316420]
      %v347 = vpack.c.bf16 %v344, %v343
      %349 = vrot.lane.b32.xlu0 %v347, 15
      %v350 = vpop.permute.xlu0 %349
      %v351 = vrot.slane %v350, 4
      %vm352 = vcmask 121856
      %v353 = vsel %vm352, %v351, %v350
      %vm355 = vcmask 1041528
      %vm356 = vmor %vm291, %vm355
      %357 = vst.msk [vmem:[#allocation2 + $0x8] sm:$0x33] %vm356, %v353
      %s358 = scalar_lea.vmem %s5, 3
      %v359 = vld [vmem:[%s358] ss:$8 sm:$0x3]
      %v361 = vperm.slane %v359, 0
      %v362 = vperm.slane %v359, 1
      %v363 = vrot.slane %v362, 4
      %v364 = vsel %vm267, %v361, %v363
      %365 = vrot.lane.b32.xlu0 %v364, 127
      %v366 = vpop.permute.xlu0 %365
      %v367 = vrot.slane %v366, 4
      %vm368 = vcmask 1039360
      %v369 = vsel %vm368, %v366, %v367
      %v371 = vmul.f32 %v261, %v369
      %373 = vst [vmem:[#allocation1] ss:$2 sm:$0xff] %v371
      %v374 = vld.sshfl [vmem:[#allocation1] sm:$0xff pattern:$0x75316420]
      %v375 = vld.sshfl [vmem:[#allocation1 + $0x8] sm:$0xff pattern:$0x75316420]
      %v378 = vpack.c.bf16 %v375, %v374
      %v380 = vrot.slane %v378, 6
      %381 = vrot.lane.b32.xlu0 %v380, 1
      %v382 = vpop.permute.xlu0 %381
      %v383 = vrot.slane %v382, 4
      %vm384 = vcmask 7168
      %v385 = vsel %vm384, %v383, %v382
      %vm387 = vcmask 1043466
      %vm388 = vmor %vm324, %vm387
      %389 = vst.msk [vmem:[#allocation2 + $0x8] sm:$0xcc] %vm388, %v385
      %391 = vst [vmem:[#allocation1] ss:$2 sm:$0xff] %v261
      %v392 = vld.sshfl [vmem:[#allocation1] sm:$0xff pattern:$0x75316420]
      %v393 = vld.sshfl [vmem:[#allocation1 + $0x8] sm:$0xff pattern:$0x75316420]
      %v396 = vpack.c.bf16 %v393, %v392
      %397 = vst [vmem:[#allocation2 + $0x10] sm:$0x33] %v396
      %s398 = scalar_lea.vmem %s5, 5
      %v399 = vld [vmem:[%s398] ss:$8 sm:$0x3]
      %v401 = vperm.slane %v399, 0
      %v402 = vperm.slane %v399, 1
      %v403 = vrot.slane %v402, 4
      %v404 = vsel %vm267, %v401, %v403
      %405 = vrot.lane.b32.xlu0 %v404, 1
      %v406 = vpop.permute.xlu0 %405
      %v407 = vrot.slane %v406, 4
      %vm408 = vcmask 7168
      %v409 = vsel %vm408, %v407, %v406
      %v411 = vmul.f32 %v261, %v409
      %413 = vst [vmem:[#allocation1] ss:$2 sm:$0xff] %v411
      %v414 = vld.sshfl [vmem:[#allocation1] sm:$0xff pattern:$0x75316420]
      %v415 = vld.sshfl [vmem:[#allocation1 + $0x8] sm:$0xff pattern:$0x75316420]
      %v418 = vpack.c.bf16 %v415, %v414
      %v420 = vrot.slane %v418, 6
      %421 = vrot.lane.b32.xlu0 %v420, 127
      %v422 = vpop.permute.xlu0 %421
      %v423 = vrot.slane %v422, 4
      %vm424 = vcmask 1039360
      %v425 = vsel %vm424, %v422, %v423
      %vm427 = vcmask 1043458
      %vm428 = vcmask 1039366
      %vm429 = vmor %vm428, %vm427
      %430 = vst.msk [vmem:[#allocation2 + $0x10] sm:$0xcc] %vm429, %v425
      %s431 = scalar_lea.vmem %s5, 6
      %v432 = vld [vmem:[%s431] ss:$8 sm:$0x3]
      %v434 = vperm.slane %v432, 0
      %v435 = vperm.slane %v432, 1
      %v436 = vrot.slane %v435, 4
      %v437 = vsel %vm267, %v434, %v436
      %438 = vrot.lane.b32.xlu0 %v437, 15
      %v439 = vpop.permute.xlu0 %438
      %v440 = vrot.slane %v439, 4
      %vm441 = vcmask 121856
      %v442 = vsel %vm441, %v440, %v439
      %v444 = vmul.f32 %v261, %v442
      %446 = vst [vmem:[#allocation1] ss:$2 sm:$0xff] %v444
      %v447 = vld.sshfl [vmem:[#allocation1] sm:$0xff pattern:$0x75316420]
      %v448 = vld.sshfl [vmem:[#allocation1 + $0x8] sm:$0xff pattern:$0x75316420]
      %v451 = vpack.c.bf16 %v448, %v447
      %453 = vrot.lane.b32.xlu0 %v451, 113
      %v454 = vpop.permute.xlu0 %453
      %v455 = vrot.slane %v454, 4
      %vm456 = vcmask 924672
      %v457 = vsel %vm456, %v454, %v455
      %vm459 = vcmask 1041408
      %vm460 = vcmask 922628
      %vm461 = vmor %vm460, %vm459
      %462 = vst.msk [vmem:[#allocation2 + $0x18] sm:$0x33] %vm461, %v457
      %s463 = scalar_lea.vmem %s5, 7
      %v464 = vld [vmem:[%s463] ss:$8 sm:$0x3]
      %v466 = vperm.slane %v464, 0
      %v467 = vperm.slane %v464, 1
      %v468 = vrot.slane %v467, 4
      %v469 = vsel %vm267, %v466, %v468
      %470 = vrot.lane.b32.xlu0 %v469, 16
      %v471 = vpop.permute.xlu0 %470
      %v472 = vrot.slane %v471, 4
      %vm473 = vcmask 130048
      %v474 = vsel %vm473, %v472, %v471
      %v476 = vmul.f32 %v261, %v474
      %478 = vst [vmem:[#allocation1] ss:$2 sm:$0xff] %v476
      %v479 = vld.sshfl [vmem:[#allocation1] sm:$0xff pattern:$0x75316420]
      %v480 = vld.sshfl [vmem:[#allocation1 + $0x8] sm:$0xff pattern:$0x75316420]
      %v483 = vpack.c.bf16 %v480, %v479
      %v485 = vrot.slane %v483, 6
      %486 = vrot.lane.b32.xlu0 %v485, 112
      %v487 = vpop.permute.xlu0 %486
      %v488 = vrot.slane %v487, 4
      %vm489 = vcmask 916480
      %v490 = vsel %vm489, %v487, %v488
      %vm492 = vcmask 916486
      %vm493 = vmor %vm492, %vm427
      %494 = vst.msk [vmem:[#allocation2 + $0x18] sm:$0xcc] %vm493, %v490
      %s495 = scalar_lea.vmem %s5, 16
      %v496 = vld [vmem:[%s495] ss:$8 sm:$0x3]
      %v498 = vperm.slane %v496, 0
      %v499 = vperm.slane %v496, 1
      %v500 = vrot.slane %v499, 4
      %v501 = vsel %vm267, %v498, %v500
      %502 = vrot.lane.b32.xlu0 %v501, 17
      %v503 = vpop.permute.xlu0 %502
      %v504 = vrot.slane %v503, 4
      %vm505 = vcmask 138240
      %v506 = vsel %vm505, %v504, %v503
      %v508 = vmul.f32 %v261, %v506
      %510 = vst [vmem:[#allocation1] ss:$2 sm:$0xff] %v508
      %v511 = vld.sshfl [vmem:[#allocation1] sm:$0xff pattern:$0x75316420]
      %v512 = vld.sshfl [vmem:[#allocation1 + $0x8] sm:$0xff pattern:$0x75316420]
      %v515 = vpack.c.bf16 %v512, %v511
      %517 = vrot.lane.b32.xlu0 %v515, 111
      %v518 = vpop.permute.xlu0 %517
      %v519 = vrot.slane %v518, 4
      %vm520 = vcmask 908288
      %v521 = vsel %vm520, %v518, %v519
      %vm523 = vcmask 906244
      %vm524 = vmor %vm523, %vm459
      %525 = vst.msk [vmem:[#allocation2 + $0x20] sm:$0x33] %vm524, %v521
      %v526 = vld [vmem:[#allocation2] sm:$0xff]
      %v527 = vld [vmem:[#allocation2 + $0x8] sm:$0xff]
      %v528 = vld [vmem:[#allocation2 + $0x10] sm:$0xff]
      %v529 = vld [vmem:[#allocation2 + $0x18] sm:$0xff]
      %v530 = vld [vmem:[#allocation2 + $0x20] sm:$0x33]
      %532 = vset.pattern.permute.xlu0 0
      %533 = vperm.xlu0 %532, %v259
      %v534 = vpop.permute.xlu0 %533
      %v541 = vunpack.c.l.b16 %v526
      %v542 = vunpack.c.h.b16 %v526
      %v543 = vunpack.c.l.b16 %v527
      %v544 = vunpack.c.h.b16 %v527
      %v545 = vunpack.c.l.b16 %v528
      %v546 = vunpack.c.h.b16 %v528
      %v547 = vunpack.c.l.b16 %v529
      %v548 = vunpack.c.h.b16 %v529
      %v549 = vunpack.c.l.b16 %v530
      %v550 = vunpack.c.h.b16 %v530
      %v551 = vpack.c.b16 %v543, %v541
      %v552 = vpack.c.b16 %v544, %v542
      %v553 = vpack.c.b16 %v547, %v545
      %v554 = vpack.c.b16 %v548, %v546
      %v555 = vpack.c.b16 %v549, %v549
      %v556 = vpack.c.b16 %v550, %v550
      %vm561 = vcmask 293888
      %v563 = vsel %vm561, %v258, 0
      %v566 = vsel %vm459, %v555, 0
      %v569 = vsel %vm459, %v556, 0
      %571 = vmatpush.bf16.msra.mxu0 0
      %572 = vmatpush.bf16.msra.mxu0 0
      %573 = vmatpush.bf16.msra.mxu0 0
      %574 = vmatpush.bf16.msra.mxu0 0
      %575 = vmatpush.bf16.msra.mxu0 0
      %576 = vmatpush.bf16.msra.mxu0 %v566
      %577 = vmatpush.bf16.msra.mxu0 %v553
      %578 = vmatpush.bf16.msra.mxu0 %v551
      %579 = vmatmul.bf16.gmra.mxu0 %v563
      %v580 = vpop.f32.mrf.mxu0
      %v581 = vadd.f32 %v534, %v580
      %v582 = vpop.f32.mrf.mxu0
      %583 = vdwg.mxu0
      %584 = vmatpush.bf16.msra.mxu0 0
      %585 = vmatpush.bf16.msra.mxu0 0
      %586 = vmatpush.bf16.msra.mxu0 0
      %587 = vmatpush.bf16.msra.mxu0 0
      %588 = vmatpush.bf16.msra.mxu0 0
      %589 = vmatpush.bf16.msra.mxu0 %v569
      %590 = vmatpush.bf16.msra.mxu0 %v554
      %591 = vmatpush.bf16.msra.mxu0 %v552
      %592 = vmatmul.bf16.gmra.mxu0 %v563
      %v593 = vpop.f32.mrf.mxu0
      %v594 = vadd.f32 %v534, %v593
      %v595 = vpop.f32.mrf.mxu0
      %596 = vdwg.mxu0
      %597 = vst [vmem:[%s251] sm:$0xff] %v581
      %598 = vst [vmem:[%s251 + $0x8] sm:$0xff] %v594
      %p599 = scmp.lt.s32.totalorder %s17, 1
      %s600 = scalar_select %p599, %s17, 1
      %s601 = smul.addr %s600, 2
      %s602 = smul.addr %s601, 8
      %s603 = scalar_lea.vmem %s6, %s602
      // Predicated region
      $region45: #{conv_block_forward.1} parent=43 // pred_check
        %p604 = pneg %p166
      $region46: #{conv_block_forward.1} parent=43 // pred_check_branch
        %606 = sbr.rel (%p604) target = $region48
      $region47: #{conv_block_forward.1} parent=43 // pred_region
        _
      $region48: #{conv_block_forward.1} parent=43 // pred_fallthru
        _
    $region44: #{conv_block_forward.1} parent=5 // pred_fallthru
      _
    %p607 = scmp.le.s32.totalorder 2, %s12
    // Predicated region
    $region49: #{conv_block_forward.1} parent=5 // pred_check
      %p608 = pneg %p607
    $region50: #{conv_block_forward.1} parent=5 // pred_check_branch
      %610 = sbr.rel (%p608) target = $region52
    $region51: #{conv_block_forward.1} parent=5 // pred_region
      %s611 = ssub.s32 %s12, 2
      // Predicated region
      $region53: #{conv_block_forward.1} parent=51 // pred_check
        %p612 = pneg %p172
      $region54: #{conv_block_forward.1} parent=51 // pred_check_branch
        %614 = sbr.rel (%p612) target = $region56
      $region55: #{conv_block_forward.1} parent=51 // pred_region
        %p615 = scmp.lt.s32.totalorder %s18, 1
        %s616 = scalar_select %p615, %s18, 1
        %s617 = smul.addr %s616, 2
        %s618 = smul.addr %s617, 8
        %s619 = scalar_lea.vmem %s6, %s618
      $region56: #{conv_block_forward.1} parent=51 // pred_fallthru
        _
    $region52: #{conv_block_forward.1} parent=5 // pred_fallthru
      _
  $region6: #{conv_block_forward.1} parent=0 // loop_footer
    %s16 = sadd.s32 1, %s12
  $region7: #{conv_block_forward.1} parent=0 // loop_footer_branch
    %11 = sbr.rel target = $region3
  $region8: #{conv_block_forward.1} parent=0 // loop_exit
    _

</llo_original>
